<compile_context>
chip_gen: v5e
topology: v5e:2x2
jax: 0.10.0
libtpu: 0.0.40
codegen_flags: <defaults>
</compile_context>

<pallas_src>
import jax
import jax.numpy as jnp
from jax.experimental import pallas as pl
from jax.experimental.pallas import tpu as pltpu

# ---- static config (baked into the kernel via closure) ----
NELX = 16
NELY = 16
HIDDEN = 32            # numNeuronsPerLyr
LATENT_DIM = 3
OUTPUT_DIM = 1 + LATENT_DIM   # searchMode == 'cubic'
OUT_PAD = 8            # output rows padded to a full sublane group
SYM_X_AXIS = True
SYM_Y_AXIS = True
BN_EPS = 1e-5

# column layout of the packed "vec" slab, shape (HIDDEN, VEC_COLS)
C_W0X, C_W0Y, C_B0, C_G0, C_BE0, C_B1, C_G1, C_BE1, C_B2 = range(9)
VEC_COLS = 9


def fc_net_kernel(xt_ref, vec_ref, mat_ref, out_ref):
    # xt_ref : (2, N)  coordinates, transposed so N is on the lane axis
    # vec_ref: (HIDDEN, VEC_COLS)  packed first-layer weight cols + biases/BN params
    # mat_ref: (HIDDEN + OUT_PAD, HIDDEN)  [w1.T ; w2.T zero-padded to 8 rows]
    # out_ref: (OUT_PAD, N)  sigmoid(final linear), rows >= OUTPUT_DIM are padding

    # --- symmetry reflection (flags are static Python bools: no iota/mask/select) ---
    xr = xt_ref[0:1, :]                                    # (1, N)
    yr = xt_ref[1:2, :]                                    # (1, N)
    hx = (0.5 * NELX + jnp.abs(xr - 0.5 * NELX)) if SYM_Y_AXIS else xr
    hy = (0.5 * NELY + jnp.abs(yr - 0.5 * NELY)) if SYM_X_AXIS else yr

    vec = vec_ref[...]                                     # (HIDDEN, VEC_COLS)

    def bn_relu6(z, g, be):
        # BatchNorm1d in training mode: batch mean, biased variance (over lanes).
        mu = jnp.mean(z, axis=1, keepdims=True)            # (HIDDEN, 1)
        var = jnp.mean((z - mu) ** 2, axis=1, keepdims=True)
        scale = g * jax.lax.rsqrt(var + BN_EPS)            # fold BN into one FMA
        shift = be - mu * scale
        return jnp.clip(z * scale + shift, 0.0, 6.0)       # ReLU6

    # --- layer 0: K=2 contraction done on the VPU (no MXU pass) ---
    z0 = (vec[:, C_W0X:C_W0X + 1] * hx
          + vec[:, C_W0Y:C_W0Y + 1] * hy
          + vec[:, C_B0:C_B0 + 1])                         # (HIDDEN, N)
    a0 = bn_relu6(z0, vec[:, C_G0:C_G0 + 1], vec[:, C_BE0:C_BE0 + 1])

    # --- layer 1: (32,32) @ (32,N) on the MXU ---
    # TODO(synk): on v5e/v6e the matmul operands could be cast to bf16 for fewer MXU
    # passes; kept f32 here to preserve <=1e-5 parity with the f32 reference.
    z1 = (jnp.dot(mat_ref[0:HIDDEN, :], a0, preferred_element_type=jnp.float32)
          + vec[:, C_B1:C_B1 + 1])
    a1 = bn_relu6(z1, vec[:, C_G1:C_G1 + 1], vec[:, C_BE1:C_BE1 + 1])

    # --- output layer (rows padded to 8): (8,32) @ (32,N), then sigmoid ---
    z2 = (jnp.dot(mat_ref[HIDDEN:HIDDEN + OUT_PAD, :], a1,
                  preferred_element_type=jnp.float32)
          + vec[0:OUT_PAD, C_B2:C_B2 + 1])
    out_ref[...] = jax.nn.sigmoid(z2)                      # (OUT_PAD, N)


def fc_net_forward(x, packed):
    # x: (N, 2) float32. BatchNorm statistics are computed over the whole batch,
    # so the kernel is launched as a single (gridless) block.
    # TODO(synk): if N is ever tiled over a grid (e.g. to use both v7x TensorCores),
    # BN statistics must be hoisted/two-passed first or per-tile stats will diverge.
    n = x.shape[0]
    xt = x.T                                               # (2, N): N on the lane axis
    vmem = pl.BlockSpec(memory_space=pltpu.MemorySpace.VMEM)
    out = pl.pallas_call(
        fc_net_kernel,
        out_shape=jax.ShapeDtypeStruct((OUT_PAD, n), jnp.float32),
        in_specs=[vmem, vmem, vmem],
        out_specs=vmem,
    )(xt, packed["vec"], packed["mat"])
    rho = out[0, :]                                        # (N,)
    t = out[1:1 + LATENT_DIM, :].T                         # (N, LATENT_DIM)
    return rho, t


# ---- host-side packing of the 11 parameter arrays into two VMEM slabs ----
def pack_params(p):
    b2_padded = jnp.concatenate(
        [p["b2"][0], jnp.zeros((HIDDEN - OUTPUT_DIM,), jnp.float32)])
    vec = jnp.stack(
        [p["w0"][0], p["w0"][1],                 # first-layer weight columns
         p["b0"][0], p["g0"][0], p["be0"][0],
         p["b1"][0], p["g1"][0], p["be1"][0],
         b2_padded],
        axis=1)                                            # (HIDDEN, VEC_COLS)
    w2t_padded = jnp.concatenate(
        [p["w2"].T, jnp.zeros((OUT_PAD - OUTPUT_DIM, HIDDEN), jnp.float32)], axis=0)
    mat = jnp.concatenate([p["w1"].T, w2t_padded], axis=0)  # (HIDDEN+OUT_PAD, HIDDEN)
    return {"vec": vec, "mat": mat}


# ---- deterministic parameter init (xavier_normal_ weights, zero biases) ----
def init_params(key):
    def xavier_normal(k, fan_in, fan_out):
        std = (2.0 / (fan_in + fan_out)) ** 0.5
        return std * jax.random.normal(k, (fan_in, fan_out), jnp.float32)

    k0, k1, k2 = jax.random.split(key, 3)
    return {
        # hidden layer 0: Linear(2 -> HIDDEN)
        "w0": xavier_normal(k0, 2, HIDDEN),
        "b0": jnp.zeros((1, HIDDEN), jnp.float32),
        "g0": jnp.ones((1, HIDDEN), jnp.float32),    # BN gamma
        "be0": jnp.zeros((1, HIDDEN), jnp.float32),  # BN beta
        # hidden layer 1: Linear(HIDDEN -> HIDDEN)
        "w1": xavier_normal(k1, HIDDEN, HIDDEN),
        "b1": jnp.zeros((1, HIDDEN), jnp.float32),
        "g1": jnp.ones((1, HIDDEN), jnp.float32),
        "be1": jnp.zeros((1, HIDDEN), jnp.float32),
        # output layer: Linear(HIDDEN -> OUTPUT_DIM)
        "w2": 0.1 * jax.random.normal(k2, (HIDDEN, OUTPUT_DIM), jnp.float32),
        "b2": jnp.zeros((1, OUTPUT_DIM), jnp.float32),
    }


# ---- pure-JAX reference for the correctness check ----
def fc_net_reference(x, params):
    xv = x[:, 0]
    yv = x[:, 1]
    if SYM_Y_AXIS:
        xv = 0.5 * NELX + jnp.abs(xv - 0.5 * NELX)
    if SYM_X_AXIS:
        yv = 0.5 * NELY + jnp.abs(yv - 0.5 * NELY)
    h = jnp.stack((xv, yv), axis=1)

    def hidden_block(h, w, b, g, be):
        z = h @ w + b
        mu = jnp.mean(z, axis=0, keepdims=True)
        var = jnp.mean((z - mu) ** 2, axis=0, keepdims=True)
        z = (z - mu) * jax.lax.rsqrt(var + BN_EPS) * g + be
        return jnp.clip(z, 0.0, 6.0)

    h = hidden_block(h, params["w0"], params["b0"], params["g0"], params["be0"])
    h = hidden_block(h, params["w1"], params["b1"], params["g1"], params["be1"])
    out = jax.nn.sigmoid(h @ params["w2"] + params["b2"])
    return out[:, 0], out[:, 1:]


if __name__ == "__main__":
    key = jax.random.PRNGKey(0)
    kx, kp = jax.random.split(key)

    # full element grid at resolution=1 (nelx*nely = 256 samples, lane-dense)
    N = NELX * NELY
    coords = jax.random.uniform(kx, (N, 2), jnp.float32)
    x = coords * jnp.array([NELX, NELY], jnp.float32)

    params = init_params(kp)
    packed = pack_params(params)

    rho, t = jax.jit(fc_net_forward)(x, packed)
    rho = jax.block_until_ready(rho)
    t = jax.block_until_ready(t)

    rho_ref, t_ref = fc_net_reference(x, params)
    assert rho.shape == (N,) and t.shape == (N, LATENT_DIM)
    assert jnp.allclose(rho, rho_ref, atol=1e-5, rtol=1e-5)
    assert jnp.allclose(t, t_ref, atol=1e-5, rtol=1e-5)

    # TODO(synk): 'simplex' searchMode branch (softmax over out[:,1:] + fixedIdx
    # clamping of rho) is not exercised here; the kernel implements 'cubic'.
    print("KERNEL_OK")
</pallas_src>

<mosaic_0001>
module attributes {stable_mosaic.version = 11 : i64} {
  func.func @fc_net_kernel(%arg0: memref<2x256xf32, #tpu.memory_space<vmem>>, %arg1: memref<32x9xf32, #tpu.memory_space<vmem>>, %arg2: memref<40x32xf32, #tpu.memory_space<vmem>>, %arg3: memref<8x256xf32, #tpu.memory_space<vmem>>) attributes {dimension_semantics = [], scalar_prefetch = 0 : i64, scratch_operands = 0 : i64, tpu.core_type = #tpu.core_type<tc>} {
    %c0 = arith.constant 0 : index
    %c0_0 = arith.constant 0 : index
    %0 = vector.load %arg0[%c0, %c0_0] : memref<2x256xf32, #tpu.memory_space<vmem>>, vector<1x256xf32>
    %c1 = arith.constant 1 : index
    %c0_1 = arith.constant 0 : index
    %1 = vector.load %arg0[%c1, %c0_1] : memref<2x256xf32, #tpu.memory_space<vmem>>, vector<1x256xf32>
    %cst = arith.constant 8.000000e+00 : f32
    %2 = vector.broadcast %cst : f32 to vector<1x256xf32>
    %3 = arith.subf %0, %2 : vector<1x256xf32>
    %4 = math.absf %3 : vector<1x256xf32>
    %cst_2 = arith.constant 8.000000e+00 : f32
    %5 = vector.broadcast %cst_2 : f32 to vector<1x256xf32>
    %6 = arith.addf %5, %4 : vector<1x256xf32>
    %cst_3 = arith.constant 8.000000e+00 : f32
    %7 = vector.broadcast %cst_3 : f32 to vector<1x256xf32>
    %8 = arith.subf %1, %7 : vector<1x256xf32>
    %9 = math.absf %8 : vector<1x256xf32>
    %cst_4 = arith.constant 8.000000e+00 : f32
    %10 = vector.broadcast %cst_4 : f32 to vector<1x256xf32>
    %11 = arith.addf %10, %9 : vector<1x256xf32>
    %c0_5 = arith.constant 0 : index
    %c0_6 = arith.constant 0 : index
    %12 = vector.load %arg1[%c0_5, %c0_6] : memref<32x9xf32, #tpu.memory_space<vmem>>, vector<32x9xf32>
    %13 = vector.extract_strided_slice %12 {offsets = [0, 0], sizes = [32, 1], strides = [1, 1]} : vector<32x9xf32> to vector<32x1xf32>
    %14 = vector.broadcast %13 : vector<32x1xf32> to vector<32x256xf32>
    %15 = vector.broadcast %6 : vector<1x256xf32> to vector<32x256xf32>
    %16 = arith.mulf %14, %15 : vector<32x256xf32>
    %17 = vector.extract_strided_slice %12 {offsets = [0, 1], sizes = [32, 1], strides = [1, 1]} : vector<32x9xf32> to vector<32x1xf32>
    %18 = vector.broadcast %17 : vector<32x1xf32> to vector<32x256xf32>
    %19 = vector.broadcast %11 : vector<1x256xf32> to vector<32x256xf32>
    %20 = arith.mulf %18, %19 : vector<32x256xf32>
    %21 = arith.addf %16, %20 : vector<32x256xf32>
    %22 = vector.extract_strided_slice %12 {offsets = [0, 2], sizes = [32, 1], strides = [1, 1]} : vector<32x9xf32> to vector<32x1xf32>
    %23 = vector.broadcast %22 : vector<32x1xf32> to vector<32x256xf32>
    %24 = arith.addf %21, %23 : vector<32x256xf32>
    %25 = vector.extract_strided_slice %12 {offsets = [0, 3], sizes = [32, 1], strides = [1, 1]} : vector<32x9xf32> to vector<32x1xf32>
    %26 = vector.extract_strided_slice %12 {offsets = [0, 4], sizes = [32, 1], strides = [1, 1]} : vector<32x9xf32> to vector<32x1xf32>
    %cst_7 = arith.constant dense<0.000000e+00> : vector<32xf32>
    %27 = vector.multi_reduction <add>, %24, %cst_7 [1] : vector<32x256xf32> to vector<32xf32>
    %28 = vector.shape_cast %27 : vector<32xf32> to vector<32x1xf32>
    %cst_8 = arith.constant 2.560000e+02 : f32
    %29 = vector.broadcast %cst_8 : f32 to vector<32x1xf32>
    %30 = arith.divf %28, %29 : vector<32x1xf32>
    %31 = vector.broadcast %30 : vector<32x1xf32> to vector<32x256xf32>
    %32 = arith.subf %24, %31 : vector<32x256xf32>
    %33 = arith.mulf %32, %32 : vector<32x256xf32>
    %cst_9 = arith.constant dense<0.000000e+00> : vector<32xf32>
    %34 = vector.multi_reduction <add>, %33, %cst_9 [1] : vector<32x256xf32> to vector<32xf32>
    %35 = vector.shape_cast %34 : vector<32xf32> to vector<32x1xf32>
    %cst_10 = arith.constant 2.560000e+02 : f32
    %36 = vector.broadcast %cst_10 : f32 to vector<32x1xf32>
    %37 = arith.divf %35, %36 : vector<32x1xf32>
    %cst_11 = arith.constant 9.99999974E-6 : f32
    %38 = vector.broadcast %cst_11 : f32 to vector<32x1xf32>
    %39 = arith.addf %37, %38 : vector<32x1xf32>
    %40 = math.rsqrt %39 : vector<32x1xf32>
    %41 = arith.mulf %25, %40 : vector<32x1xf32>
    %42 = arith.mulf %30, %41 : vector<32x1xf32>
    %43 = arith.subf %26, %42 : vector<32x1xf32>
    %44 = vector.broadcast %41 : vector<32x1xf32> to vector<32x256xf32>
    %45 = arith.mulf %24, %44 : vector<32x256xf32>
    %46 = vector.broadcast %43 : vector<32x1xf32> to vector<32x256xf32>
    %47 = arith.addf %45, %46 : vector<32x256xf32>
    %cst_12 = arith.constant 0.000000e+00 : f32
    %cst_13 = arith.constant 6.000000e+00 : f32
    %48 = vector.broadcast %cst_12 : f32 to vector<32x256xf32>
    %49 = arith.maximumf %48, %47 : vector<32x256xf32>
    %50 = vector.broadcast %cst_13 : f32 to vector<32x256xf32>
    %51 = arith.minimumf %50, %49 : vector<32x256xf32>
    %c0_14 = arith.constant 0 : index
    %c0_15 = arith.constant 0 : index
    %52 = vector.load %arg2[%c0_14, %c0_15] : memref<40x32xf32, #tpu.memory_space<vmem>>, vector<32x32xf32>
    %cst_16 = arith.constant dense<0.000000e+00> : vector<32x256xf32>
    %53 = tpu.matmul %52, %51, %cst_16 {dimension_numbers = #tpu.dot_dimension_numbers<[1], [0], [0], [1], [0, 0, 1, 1], [], []>} : vector<32x32xf32>, vector<32x256xf32>, vector<32x256xf32> -> vector<32x256xf32>
    %54 = vector.extract_strided_slice %12 {offsets = [0, 5], sizes = [32, 1], strides = [1, 1]} : vector<32x9xf32> to vector<32x1xf32>
    %55 = vector.broadcast %54 : vector<32x1xf32> to vector<32x256xf32>
    %56 = arith.addf %53, %55 : vector<32x256xf32>
    %57 = vector.extract_strided_slice %12 {offsets = [0, 6], sizes = [32, 1], strides = [1, 1]} : vector<32x9xf32> to vector<32x1xf32>
    %58 = vector.extract_strided_slice %12 {offsets = [0, 7], sizes = [32, 1], strides = [1, 1]} : vector<32x9xf32> to vector<32x1xf32>
    %cst_17 = arith.constant dense<0.000000e+00> : vector<32xf32>
    %59 = vector.multi_reduction <add>, %56, %cst_17 [1] : vector<32x256xf32> to vector<32xf32>
    %60 = vector.shape_cast %59 : vector<32xf32> to vector<32x1xf32>
    %cst_18 = arith.constant 2.560000e+02 : f32
    %61 = vector.broadcast %cst_18 : f32 to vector<32x1xf32>
    %62 = arith.divf %60, %61 : vector<32x1xf32>
    %63 = vector.broadcast %62 : vector<32x1xf32> to vector<32x256xf32>
    %64 = arith.subf %56, %63 : vector<32x256xf32>
    %65 = arith.mulf %64, %64 : vector<32x256xf32>
    %cst_19 = arith.constant dense<0.000000e+00> : vector<32xf32>
    %66 = vector.multi_reduction <add>, %65, %cst_19 [1] : vector<32x256xf32> to vector<32xf32>
    %67 = vector.shape_cast %66 : vector<32xf32> to vector<32x1xf32>
    %cst_20 = arith.constant 2.560000e+02 : f32
    %68 = vector.broadcast %cst_20 : f32 to vector<32x1xf32>
    %69 = arith.divf %67, %68 : vector<32x1xf32>
    %cst_21 = arith.constant 9.99999974E-6 : f32
    %70 = vector.broadcast %cst_21 : f32 to vector<32x1xf32>
    %71 = arith.addf %69, %70 : vector<32x1xf32>
    %72 = math.rsqrt %71 : vector<32x1xf32>
    %73 = arith.mulf %57, %72 : vector<32x1xf32>
    %74 = arith.mulf %62, %73 : vector<32x1xf32>
    %75 = arith.subf %58, %74 : vector<32x1xf32>
    %76 = vector.broadcast %73 : vector<32x1xf32> to vector<32x256xf32>
    %77 = arith.mulf %56, %76 : vector<32x256xf32>
    %78 = vector.broadcast %75 : vector<32x1xf32> to vector<32x256xf32>
    %79 = arith.addf %77, %78 : vector<32x256xf32>
    %cst_22 = arith.constant 0.000000e+00 : f32
    %cst_23 = arith.constant 6.000000e+00 : f32
    %80 = vector.broadcast %cst_22 : f32 to vector<32x256xf32>
    %81 = arith.maximumf %80, %79 : vector<32x256xf32>
    %82 = vector.broadcast %cst_23 : f32 to vector<32x256xf32>
    %83 = arith.minimumf %82, %81 : vector<32x256xf32>
    %c32 = arith.constant 32 : index
    %c0_24 = arith.constant 0 : index
    %84 = vector.load %arg2[%c32, %c0_24] : memref<40x32xf32, #tpu.memory_space<vmem>>, vector<8x32xf32>
    %cst_25 = arith.constant dense<0.000000e+00> : vector<8x256xf32>
    %85 = tpu.matmul %84, %83, %cst_25 {dimension_numbers = #tpu.dot_dimension_numbers<[1], [0], [0], [1], [0, 0, 1, 1], [], []>} : vector<8x32xf32>, vector<32x256xf32>, vector<8x256xf32> -> vector<8x256xf32>
    %86 = vector.extract_strided_slice %12 {offsets = [0, 8], sizes = [8, 1], strides = [1, 1]} : vector<32x9xf32> to vector<8x1xf32>
    %87 = vector.broadcast %86 : vector<8x1xf32> to vector<8x256xf32>
    %88 = arith.addf %85, %87 : vector<8x256xf32>
    %89 = arith.negf %88 : vector<8x256xf32>
    %90 = math.exp %89 : vector<8x256xf32>
    %cst_26 = arith.constant 1.000000e+00 : f32
    %91 = vector.broadcast %cst_26 : f32 to vector<8x256xf32>
    %92 = arith.addf %91, %90 : vector<8x256xf32>
    %93 = arith.divf %91, %92 : vector<8x256xf32>
    %c0_27 = arith.constant 0 : index
    %c0_28 = arith.constant 0 : index
    %94 = vector.load %arg3[%c0_27, %c0_28] : memref<8x256xf32, #tpu.memory_space<vmem>>, vector<8x256xf32>
    tpu.vector_store %arg3[%c0_27, %c0_28], %93 {strides = array<i32>} : memref<8x256xf32, #tpu.memory_space<vmem>>, vector<8x256xf32>,
    return
  }
}

</mosaic_0001>

<llo_original>
// kernel: fc_net_forward.1
$region0: #{fc_net_forward.1}
  #allocation0 [shape = 'u32[]', space=smem, size = 0x4, offset = 0x4, fixed_abs, tag = 'smem constant byte address 0x4 - core index']
  #allocation1 [shape = 'u32[72,128]{1,0:T(1,128)}', space=vmem, size = 0x9000, scoped, tag = 'internal scratch']
  %s0 = inlined_call_operand.vmem [shape: f32[2,256], index: 0, kind: input, shape index: {}]
  %s1 = inlined_call_operand.vmem [shape: f32[32,9], index: 1, kind: input, shape index: {}]
  %s2 = inlined_call_operand.vmem [shape: f32[40,32], index: 2, kind: input, shape index: {}]
  %s3 = inlined_call_operand.vmem [shape: f32[8,256], index: 3, kind: output, shape index: {}]
  %s4 = sld [smem:[#allocation0]]
  $region22: #{fc_net_forward.1} parent=0
    _
  %s6 = ssub.s32 1, %s4
  %s7 = scalar_select 0, %s6, %s4
  // Predicated region
  $region2: #{fc_net_forward.1} parent=0 // pred_check
    _
  $region3: #{fc_net_forward.1} parent=0 // pred_check_branch
    %9 = sbr.rel (0) target = $region5
  $region4: #{fc_net_forward.1} parent=0 // pred_region
    _
  $region5: #{fc_net_forward.1} parent=0 // pred_fallthru
    _
  // Predicated region
  $region6: #{fc_net_forward.1} parent=0 // pred_check
    _
  $region7: #{fc_net_forward.1} parent=0 // pred_check_branch
    %11 = sbr.rel (0) target = $region9
  $region8: #{fc_net_forward.1} parent=0 // pred_region
    _
  $region9: #{fc_net_forward.1} parent=0 // pred_fallthru
    _
  // Predicated region
  $region10: #{fc_net_forward.1} parent=0 // pred_check
    _
  $region11: #{fc_net_forward.1} parent=0 // pred_check_branch
    %13 = sbr.rel (0) target = $region13
  $region12: #{fc_net_forward.1} parent=0 // pred_region
    _
  $region13: #{fc_net_forward.1} parent=0 // pred_fallthru
    _
  %v14 = vld [vmem:[%s0] ss:$2 sm:$0x3]
  %s15 = scalar_lea.vmem %s0, 1
  %v16 = vld [vmem:[%s15] ss:$2 sm:$0x3]
  %v17 = vsub.f32 %v14, 8.0
  %v18 = vand.u32 2147483647, %v17
  %v19 = vadd.f32 %v18, 8.0
  %v20 = vsub.f32 %v16, 8.0
  %v21 = vand.u32 2147483647, %v20
  %v22 = vadd.f32 %v21, 8.0
  %v23 = vld [vmem:[%s1] sm:$0xff]
  %v24 = vld [vmem:[%s1 + $0x8] sm:$0xff]
  %v25 = vld [vmem:[%s1 + $0x10] sm:$0xff]
  %v26 = vld [vmem:[%s1 + $0x18] sm:$0xff]
  %28 = vset.pattern.permute.xlu0 0
  %29 = vperm.xlu0 %28, %v23
  %v30 = vpop.permute.xlu0 %29
  %33 = vset.pattern.permute.xlu0 0
  %34 = vperm.xlu0 %33, %v24
  %v35 = vpop.permute.xlu0 %34
  %38 = vset.pattern.permute.xlu0 0
  %39 = vperm.xlu0 %38, %v25
  %v40 = vpop.permute.xlu0 %39
  %43 = vset.pattern.permute.xlu0 0
  %44 = vperm.xlu0 %43, %v26
  %v45 = vpop.permute.xlu0 %44
  %v48 = vperm.slane %v19, 0
  %v49 = vperm.slane %v19, 1
  %v52 = vmul.f32 %v30, %v48
  %v53 = vmul.f32 %v30, %v49
  %v54 = vmul.f32 %v35, %v48
  %v55 = vmul.f32 %v35, %v49
  %v56 = vmul.f32 %v40, %v48
  %v57 = vmul.f32 %v40, %v49
  %v58 = vmul.f32 %v45, %v48
  %v59 = vmul.f32 %v45, %v49
  %60 = vset.pattern.permute.xlu0 1
  %61 = vperm.xlu0 %60, %v23
  %v62 = vpop.permute.xlu0 %61
  %64 = vset.pattern.permute.xlu0 1
  %65 = vperm.xlu0 %64, %v24
  %v66 = vpop.permute.xlu0 %65
  %68 = vset.pattern.permute.xlu0 1
  %69 = vperm.xlu0 %68, %v25
  %v70 = vpop.permute.xlu0 %69
  %72 = vset.pattern.permute.xlu0 1
  %73 = vperm.xlu0 %72, %v26
  %v74 = vpop.permute.xlu0 %73
  %v77 = vperm.slane %v22, 0
  %v78 = vperm.slane %v22, 1
  %v81 = vmul.f32 %v62, %v77
  %v82 = vmul.f32 %v62, %v78
  %v83 = vmul.f32 %v66, %v77
  %v84 = vmul.f32 %v66, %v78
  %v85 = vmul.f32 %v70, %v77
  %v86 = vmul.f32 %v70, %v78
  %v87 = vmul.f32 %v74, %v77
  %v88 = vmul.f32 %v74, %v78
  %v89 = vadd.f32 %v52, %v81
  %v90 = vadd.f32 %v53, %v82
  %v91 = vadd.f32 %v54, %v83
  %v92 = vadd.f32 %v55, %v84
  %v93 = vadd.f32 %v56, %v85
  %v94 = vadd.f32 %v57, %v86
  %v95 = vadd.f32 %v58, %v87
  %v96 = vadd.f32 %v59, %v88
  %97 = vset.pattern.permute.xlu0 2
  %98 = vperm.xlu0 %97, %v23
  %v99 = vpop.permute.xlu0 %98
  %101 = vset.pattern.permute.xlu0 2
  %102 = vperm.xlu0 %101, %v24
  %v103 = vpop.permute.xlu0 %102
  %105 = vset.pattern.permute.xlu0 2
  %106 = vperm.xlu0 %105, %v25
  %v107 = vpop.permute.xlu0 %106
  %109 = vset.pattern.permute.xlu0 2
  %110 = vperm.xlu0 %109, %v26
  %v111 = vpop.permute.xlu0 %110
  %v113 = vadd.f32 %v89, %v99
  %v114 = vadd.f32 %v90, %v99
  %v115 = vadd.f32 %v91, %v103
  %v116 = vadd.f32 %v92, %v103
  %v117 = vadd.f32 %v93, %v107
  %v118 = vadd.f32 %v94, %v107
  %v119 = vadd.f32 %v95, %v111
  %v120 = vadd.f32 %v96, %v111
  %v121 = vadd.f32 %v113, %v114
  %122 = vadd.xlane.f32.xlu0 %v121
  %v123 = vpop.xlane.xlu0 %122
  %v124 = vadd.f32 %v115, %v116
  %125 = vadd.xlane.f32.xlu0 %v124
  %v126 = vpop.xlane.xlu0 %125
  %v127 = vadd.f32 %v117, %v118
  %128 = vadd.xlane.f32.xlu0 %v127
  %v129 = vpop.xlane.xlu0 %128
  %v130 = vadd.f32 %v119, %v120
  %131 = vadd.xlane.f32.xlu0 %v130
  %v132 = vpop.xlane.xlu0 %131
  %v133 = vrcp.pop 256.0
  %v134 = vmul.f32 256.0, %v133
  %v135 = vsub.f32 1.0, %v134
  %v136 = vmul.f32 %v133, %v135
  %v137 = vadd.f32 %v133, %v136
  %vm138 = vweird.f32 %v133
  %v139 = vsel %vm138, %v133, %v137
  %v140 = vmul.f32 %v123, %v139
  %v141 = vmul.f32 %v126, %v139
  %v142 = vmul.f32 %v129, %v139
  %v143 = vmul.f32 %v132, %v139
  %v144 = vsub.f32 %v113, %v140
  %v145 = vsub.f32 %v114, %v140
  %v146 = vsub.f32 %v115, %v141
  %v147 = vsub.f32 %v116, %v141
  %v148 = vsub.f32 %v117, %v142
  %v149 = vsub.f32 %v118, %v142
  %v150 = vsub.f32 %v119, %v143
  %v151 = vsub.f32 %v120, %v143
  %v152 = vmul.f32 %v144, %v144
  %v153 = vmul.f32 %v145, %v145
  %v154 = vmul.f32 %v146, %v146
  %v155 = vmul.f32 %v147, %v147
  %v156 = vmul.f32 %v148, %v148
  %v157 = vmul.f32 %v149, %v149
  %v158 = vmul.f32 %v150, %v150
  %v159 = vmul.f32 %v151, %v151
  %v160 = vadd.f32 %v152, %v153
  %161 = vadd.xlane.f32.xlu0 %v160
  %v162 = vpop.xlane.xlu0 %161
  %v163 = vadd.f32 %v154, %v155
  %164 = vadd.xlane.f32.xlu0 %v163
  %v165 = vpop.xlane.xlu0 %164
  %v166 = vadd.f32 %v156, %v157
  %167 = vadd.xlane.f32.xlu0 %v166
  %v168 = vpop.xlane.xlu0 %167
  %v169 = vadd.f32 %v158, %v159
  %170 = vadd.xlane.f32.xlu0 %v169
  %v171 = vpop.xlane.xlu0 %170
  %v172 = vmul.f32 %v162, %v139
  %v173 = vmul.f32 %v165, %v139
  %v174 = vmul.f32 %v168, %v139
  %v175 = vmul.f32 %v171, %v139
  %v176 = vadd.f32 %v172, 1e-05
  %v177 = vadd.f32 %v173, 1e-05
  %v178 = vadd.f32 %v174, 1e-05
  %v179 = vadd.f32 %v175, 1e-05
  %v180 = vrsqrt.pop %v176
  %v181 = vmul.f32 %v180, %v176
  %v182 = vmul.f32 %v181, %v180
  %v183 = vmul.f32 0.5, %v182
  %v184 = vsub.f32 1.5, %v183
  %v185 = vmul.f32 %v180, %v184
  %vm186 = vweird.f32 %v176
  %vm187 = vweird.f32 %v180
  %vm188 = vmor %vm186, %vm187
  %v189 = vsel %vm188, %v180, %v185
  %v190 = vrsqrt.pop %v177
  %v191 = vmul.f32 %v190, %v177
  %v192 = vmul.f32 %v191, %v190
  %v193 = vmul.f32 0.5, %v192
  %v194 = vsub.f32 1.5, %v193
  %v195 = vmul.f32 %v190, %v194
  %vm196 = vweird.f32 %v177
  %vm197 = vweird.f32 %v190
  %vm198 = vmor %vm196, %vm197
  %v199 = vsel %vm198, %v190, %v195
  %v200 = vrsqrt.pop %v178
  %v201 = vmul.f32 %v200, %v178
  %v202 = vmul.f32 %v201, %v200
  %v203 = vmul.f32 0.5, %v202
  %v204 = vsub.f32 1.5, %v203
  %v205 = vmul.f32 %v200, %v204
  %vm206 = vweird.f32 %v178
  %vm207 = vweird.f32 %v200
  %vm208 = vmor %vm206, %vm207
  %v209 = vsel %vm208, %v200, %v205
  %v210 = vrsqrt.pop %v179
  %v211 = vmul.f32 %v210, %v179
  %v212 = vmul.f32 %v211, %v210
  %v213 = vmul.f32 0.5, %v212
  %v214 = vsub.f32 1.5, %v213
  %v215 = vmul.f32 %v210, %v214
  %vm216 = vweird.f32 %v179
  %vm217 = vweird.f32 %v210
  %vm218 = vmor %vm216, %vm217
  %v219 = vsel %vm218, %v210, %v215
  %v220 = vmul.f32 %v23, %v189
  %v221 = vmul.f32 %v24, %v199
  %v222 = vmul.f32 %v25, %v209
  %v223 = vmul.f32 %v26, %v219
  %v224 = vmul.f32 %v140, %v220
  %v225 = vmul.f32 %v141, %v221
  %v226 = vmul.f32 %v142, %v222
  %v227 = vmul.f32 %v143, %v223
  %232 = vrot.lane.b32.xlu0 %v224, 1
  %v233 = vpop.permute.xlu0 %232
  %234 = vrot.lane.b32.xlu0 %v225, 1
  %v235 = vpop.permute.xlu0 %234
  %236 = vrot.lane.b32.xlu0 %v226, 1
  %v237 = vpop.permute.xlu0 %236
  %238 = vrot.lane.b32.xlu0 %v227, 1
  %v239 = vpop.permute.xlu0 %238
  %v244 = vsub.f32 %v23, %v233
  %v245 = vsub.f32 %v24, %v235
  %v246 = vsub.f32 %v25, %v237
  %v247 = vsub.f32 %v26, %v239
  %249 = vset.pattern.permute.xlu0 3
  %250 = vperm.xlu0 %249, %v220
  %v251 = vpop.permute.xlu0 %250
  %254 = vset.pattern.permute.xlu0 3
  %255 = vperm.xlu0 %254, %v221
  %v256 = vpop.permute.xlu0 %255
  %259 = vset.pattern.permute.xlu0 3
  %260 = vperm.xlu0 %259, %v222
  %v261 = vpop.permute.xlu0 %260
  %264 = vset.pattern.permute.xlu0 3
  %265 = vperm.xlu0 %264, %v223
  %v266 = vpop.permute.xlu0 %265
  %v268 = vmul.f32 %v113, %v251
  %v269 = vmul.f32 %v114, %v251
  %v270 = vmul.f32 %v115, %v256
  %v271 = vmul.f32 %v116, %v256
  %v272 = vmul.f32 %v117, %v261
  %v273 = vmul.f32 %v118, %v261
  %v274 = vmul.f32 %v119, %v266
  %v275 = vmul.f32 %v120, %v266
  %277 = vset.pattern.permute.xlu0 4
  %278 = vperm.xlu0 %277, %v244
  %v279 = vpop.permute.xlu0 %278
  %282 = vset.pattern.permute.xlu0 4
  %283 = vperm.xlu0 %282, %v245
  %v284 = vpop.permute.xlu0 %283
  %287 = vset.pattern.permute.xlu0 4
  %288 = vperm.xlu0 %287, %v246
  %v289 = vpop.permute.xlu0 %288
  %292 = vset.pattern.permute.xlu0 4
  %293 = vperm.xlu0 %292, %v247
  %v294 = vpop.permute.xlu0 %293
  %v296 = vadd.f32 %v268, %v279
  %v297 = vadd.f32 %v269, %v279
  %v298 = vadd.f32 %v270, %v284
  %v299 = vadd.f32 %v271, %v284
  %v300 = vadd.f32 %v272, %v289
  %v301 = vadd.f32 %v273, %v289
  %v302 = vadd.f32 %v274, %v294
  %v303 = vadd.f32 %v275, %v294
  %v304 = vmax.f32 %v296, 0.0
  %v305 = vmax.f32 %v297, 0.0
  %v306 = vmax.f32 %v298, 0.0
  %v307 = vmax.f32 %v299, 0.0
  %v308 = vmax.f32 %v300, 0.0
  %v309 = vmax.f32 %v301, 0.0
  %v310 = vmax.f32 %v302, 0.0
  %v311 = vmax.f32 %v303, 0.0
  %v312 = vmin.f32 %v304, 6.0
  %v313 = vmin.f32 %v305, 6.0
  %v314 = vmin.f32 %v306, 6.0
  %v315 = vmin.f32 %v307, 6.0
  %v316 = vmin.f32 %v308, 6.0
  %v317 = vmin.f32 %v309, 6.0
  %v318 = vmin.f32 %v310, 6.0
  %v319 = vmin.f32 %v311, 6.0
  %v320 = vld [vmem:[%s2] sm:$0xff]
  %v321 = vld [vmem:[%s2 + $0x8] sm:$0xff]
  %v322 = vld [vmem:[%s2 + $0x10] sm:$0xff]
  %v323 = vld [vmem:[%s2 + $0x18] sm:$0xff]
  %324 = vset.pattern.permute.xlu0 5
  %325 = vperm.xlu0 %324, %v23
  %v326 = vpop.permute.xlu0 %325
  %328 = vset.pattern.permute.xlu0 5
  %329 = vperm.xlu0 %328, %v24
  %v330 = vpop.permute.xlu0 %329
  %332 = vset.pattern.permute.xlu0 5
  %333 = vperm.xlu0 %332, %v25
  %v334 = vpop.permute.xlu0 %333
  %336 = vset.pattern.permute.xlu0 5
  %337 = vperm.xlu0 %336, %v26
  %v338 = vpop.permute.xlu0 %337
  %vm340 = vcmask 261120
  %v342 = vsel %vm340, %v320, 0
  %v345 = vsel %vm340, %v321, 0
  %v348 = vsel %vm340, %v322, 0
  %v351 = vsel %vm340, %v323, 0
  %353 = vmatpush.msra.mxu0 0.0
  %354 = vmatpush.msra.mxu0 0.0
  %355 = vmatpush.msra.mxu0 0.0
  %356 = vmatpush.msra.mxu0 0.0
  %357 = vmatpush.msra.mxu0 0.0
  %358 = vmatpush.msra.mxu0 0.0
  %359 = vmatpush.msra.mxu0 0.0
  %360 = vmatpush.msra.mxu0 0.0
  %361 = vmatpush.msra.mxu0 0.0
  %362 = vmatpush.msra.mxu0 0.0
  %363 = vmatpush.msra.mxu0 0.0
  %364 = vmatpush.msra.mxu0 0.0
  %365 = vmatpush.msra.mxu0 %v318
  %366 = vmatpush.msra.mxu0 %v316
  %367 = vmatpush.msra.mxu0 %v314
  %368 = vmatpush.msra.mxu0 %v312
  %369 = vmatmul.f32.gmra.mxu0 %v342
  %v370 = vpop.f32.mrf.mxu0
  %v371 = vadd.f32 %v326, %v370
  %372 = vmatmul.f32.gmra.mxu0 %v345
  %v373 = vpop.f32.mrf.mxu0
  %v374 = vadd.f32 %v330, %v373
  %375 = vmatmul.f32.gmra.mxu0 %v348
  %v376 = vpop.f32.mrf.mxu0
  %v377 = vadd.f32 %v334, %v376
  %378 = vmatmul.f32.gmra.mxu0 %v351
  %v379 = vpop.f32.mrf.mxu0
  %v380 = vadd.f32 %v338, %v379
  %381 = vdwg.mxu0
  %382 = vmatpush.msra.mxu0 0.0
  %383 = vmatpush.msra.mxu0 0.0
  %384 = vmatpush.msra.mxu0 0.0
  %385 = vmatpush.msra.mxu0 0.0
  %386 = vmatpush.msra.mxu0 0.0
  %387 = vmatpush.msra.mxu0 0.0
  %388 = vmatpush.msra.mxu0 0.0
  %389 = vmatpush.msra.mxu0 0.0
  %390 = vmatpush.msra.mxu0 0.0
  %391 = vmatpush.msra.mxu0 0.0
  %392 = vmatpush.msra.mxu0 0.0
  %393 = vmatpush.msra.mxu0 0.0
  %394 = vmatpush.msra.mxu0 %v319
  %395 = vmatpush.msra.mxu0 %v317
  %396 = vmatpush.msra.mxu0 %v315
  %397 = vmatpush.msra.mxu0 %v313
  %398 = vmatmul.f32.gmra.mxu0 %v342
  %v399 = vpop.f32.mrf.mxu0
  %v400 = vadd.f32 %v326, %v399
  %401 = vmatmul.f32.gmra.mxu0 %v345
  %v402 = vpop.f32.mrf.mxu0
  %v403 = vadd.f32 %v330, %v402
  %404 = vmatmul.f32.gmra.mxu0 %v348
  %v405 = vpop.f32.mrf.mxu0
  %v406 = vadd.f32 %v334, %v405
  %407 = vmatmul.f32.gmra.mxu0 %v351
  %v408 = vpop.f32.mrf.mxu0
  %v409 = vadd.f32 %v338, %v408
  %410 = vdwg.mxu0
  %v411 = vadd.f32 %v371, %v400
  %412 = vadd.xlane.f32.xlu0 %v411
  %v413 = vpop.xlane.xlu0 %412
  %v414 = vadd.f32 %v374, %v403
  %415 = vadd.xlane.f32.xlu0 %v414
  %v416 = vpop.xlane.xlu0 %415
  %v417 = vadd.f32 %v377, %v406
  %418 = vadd.xlane.f32.xlu0 %v417
  %v419 = vpop.xlane.xlu0 %418
  %v420 = vadd.f32 %v380, %v409
  %421 = vadd.xlane.f32.xlu0 %v420
  %v422 = vpop.xlane.xlu0 %421
  %v423 = vmul.f32 %v413, %v139
  %v424 = vmul.f32 %v416, %v139
  %v425 = vmul.f32 %v419, %v139
  %v426 = vmul.f32 %v422, %v139
  %v427 = vsub.f32 %v371, %v423
  %v428 = vsub.f32 %v400, %v423
  %v429 = vsub.f32 %v374, %v424
  %v430 = vsub.f32 %v403, %v424
  %v431 = vsub.f32 %v377, %v425
  %v432 = vsub.f32 %v406, %v425
  %v433 = vsub.f32 %v380, %v426
  %v434 = vsub.f32 %v409, %v426
  %v435 = vmul.f32 %v427, %v427
  %v436 = vmul.f32 %v428, %v428
  %v437 = vmul.f32 %v429, %v429
  %v438 = vmul.f32 %v430, %v430
  %v439 = vmul.f32 %v431, %v431
  %v440 = vmul.f32 %v432, %v432
  %v441 = vmul.f32 %v433, %v433
  %v442 = vmul.f32 %v434, %v434
  %v443 = vadd.f32 %v435, %v436
  %444 = vadd.xlane.f32.xlu0 %v443
  %v445 = vpop.xlane.xlu0 %444
  %v446 = vadd.f32 %v437, %v438
  %447 = vadd.xlane.f32.xlu0 %v446
  %v448 = vpop.xlane.xlu0 %447
  %v449 = vadd.f32 %v439, %v440
  %450 = vadd.xlane.f32.xlu0 %v449
  %v451 = vpop.xlane.xlu0 %450
  %v452 = vadd.f32 %v441, %v442
  %453 = vadd.xlane.f32.xlu0 %v452
  %v454 = vpop.xlane.xlu0 %453
  %v455 = vmul.f32 %v445, %v139
  %v456 = vmul.f32 %v448, %v139
  %v457 = vmul.f32 %v451, %v139
  %v458 = vmul.f32 %v454, %v139
  %v459 = vadd.f32 %v455, 1e-05
  %v460 = vadd.f32 %v456, 1e-05
  %v461 = vadd.f32 %v457, 1e-05
  %v462 = vadd.f32 %v458, 1e-05
  %v463 = vrsqrt.pop %v459
  %v464 = vmul.f32 %v463, %v459
  %v465 = vmul.f32 %v464, %v463
  %v466 = vmul.f32 0.5, %v465
  %v467 = vsub.f32 1.5, %v466
  %v468 = vmul.f32 %v463, %v467
  %vm469 = vweird.f32 %v459
  %vm470 = vweird.f32 %v463
  %vm471 = vmor %vm469, %vm470
  %v472 = vsel %vm471, %v463, %v468
  %v473 = vrsqrt.pop %v460
  %v474 = vmul.f32 %v473, %v460
  %v475 = vmul.f32 %v474, %v473
  %v476 = vmul.f32 0.5, %v475
  %v477 = vsub.f32 1.5, %v476
  %v478 = vmul.f32 %v473, %v477
  %vm479 = vweird.f32 %v460
  %vm480 = vweird.f32 %v473
  %vm481 = vmor %vm479, %vm480
  %v482 = vsel %vm481, %v473, %v478
  %v483 = vrsqrt.pop %v461
  %v484 = vmul.f32 %v483, %v461
  %v485 = vmul.f32 %v484, %v483
  %v486 = vmul.f32 0.5, %v485
  %v487 = vsub.f32 1.5, %v486
  %v488 = vmul.f32 %v483, %v487
  %vm489 = vweird.f32 %v461
  %vm490 = vweird.f32 %v483
  %vm491 = vmor %vm489, %vm490
  %v492 = vsel %vm491, %v483, %v488
  %v493 = vrsqrt.pop %v462
  %v494 = vmul.f32 %v493, %v462
  %v495 = vmul.f32 %v494, %v493
  %v496 = vmul.f32 0.5, %v495
  %v497 = vsub.f32 1.5, %v496
  %v498 = vmul.f32 %v493, %v497
  %vm499 = vweird.f32 %v462
  %vm500 = vweird.f32 %v493
  %vm501 = vmor %vm499, %vm500
  %v502 = vsel %vm501, %v493, %v498
  %v503 = vmul.f32 %v23, %v472
  %v504 = vmul.f32 %v24, %v482
  %v505 = vmul.f32 %v25, %v492
  %v506 = vmul.f32 %v26, %v502
  %v507 = vmul.f32 %v423, %v503
  %v508 = vmul.f32 %v424, %v504
  %v509 = vmul.f32 %v425, %v505
  %v510 = vmul.f32 %v426, %v506
  %515 = vrot.lane.b32.xlu0 %v507, 1
  %v516 = vpop.permute.xlu0 %515
  %517 = vrot.lane.b32.xlu0 %v508, 1
  %v518 = vpop.permute.xlu0 %517
  %519 = vrot.lane.b32.xlu0 %v509, 1
  %v520 = vpop.permute.xlu0 %519
  %521 = vrot.lane.b32.xlu0 %v510, 1
  %v522 = vpop.permute.xlu0 %521
  %v527 = vsub.f32 %v23, %v516
  %v528 = vsub.f32 %v24, %v518
  %v529 = vsub.f32 %v25, %v520
  %v530 = vsub.f32 %v26, %v522
  %532 = vset.pattern.permute.xlu0 6
  %533 = vperm.xlu0 %532, %v503
  %v534 = vpop.permute.xlu0 %533
  %537 = vset.pattern.permute.xlu0 6
  %538 = vperm.xlu0 %537, %v504
  %v539 = vpop.permute.xlu0 %538
  %542 = vset.pattern.permute.xlu0 6
  %543 = vperm.xlu0 %542, %v505
  %v544 = vpop.permute.xlu0 %543
  %547 = vset.pattern.permute.xlu0 6
  %548 = vperm.xlu0 %547, %v506
  %v549 = vpop.permute.xlu0 %548
  %v551 = vmul.f32 %v371, %v534
  %v552 = vmul.f32 %v400, %v534
  %v553 = vmul.f32 %v374, %v539
  %v554 = vmul.f32 %v403, %v539
  %v555 = vmul.f32 %v377, %v544
  %v556 = vmul.f32 %v406, %v544
  %v557 = vmul.f32 %v380, %v549
  %v558 = vmul.f32 %v409, %v549
  %560 = vset.pattern.permute.xlu0 7
  %561 = vperm.xlu0 %560, %v527
  %v562 = vpop.permute.xlu0 %561
  %565 = vset.pattern.permute.xlu0 7
  %566 = vperm.xlu0 %565, %v528
  %v567 = vpop.permute.xlu0 %566
  %570 = vset.pattern.permute.xlu0 7
  %571 = vperm.xlu0 %570, %v529
  %v572 = vpop.permute.xlu0 %571
  %575 = vset.pattern.permute.xlu0 7
  %576 = vperm.xlu0 %575, %v530
  %v577 = vpop.permute.xlu0 %576
  %v579 = vadd.f32 %v551, %v562
  %v580 = vadd.f32 %v552, %v562
  %v581 = vadd.f32 %v553, %v567
  %v582 = vadd.f32 %v554, %v567
  %v583 = vadd.f32 %v555, %v572
  %v584 = vadd.f32 %v556, %v572
  %v585 = vadd.f32 %v557, %v577
  %v586 = vadd.f32 %v558, %v577
  %v587 = vmax.f32 %v579, 0.0
  %v588 = vmax.f32 %v580, 0.0
  %v589 = vmax.f32 %v581, 0.0
  %v590 = vmax.f32 %v582, 0.0
  %v591 = vmax.f32 %v583, 0.0
  %v592 = vmax.f32 %v584, 0.0
  %v593 = vmax.f32 %v585, 0.0
  %v594 = vmax.f32 %v586, 0.0
  %v595 = vmin.f32 %v587, 6.0
  %v596 = vmin.f32 %v588, 6.0
  %v597 = vmin.f32 %v589, 6.0
  %v598 = vmin.f32 %v590, 6.0
  %v599 = vmin.f32 %v591, 6.0
  %v600 = vmin.f32 %v592, 6.0
  %v601 = vmin.f32 %v593, 6.0
  %v602 = vmin.f32 %v594, 6.0
  %v603 = vld [vmem:[%s2 + $0x20] sm:$0xff]
  %604 = vset.pattern.permute.xlu0 8
  %605 = vperm.xlu0 %604, %v23
  %v606 = vpop.permute.xlu0 %605
  %v609 = vsel %vm340, %v603, 0
  %611 = vmatpush.msra.mxu0 0.0
  %612 = vmatpush.msra.mxu0 0.0
  %613 = vmatpush.msra.mxu0 0.0
  %614 = vmatpush.msra.mxu0 0.0
  %615 = vmatpush.msra.mxu0 0.0
  %616 = vmatpush.msra.mxu0 0.0
  %617 = vmatpush.msra.mxu0 0.0
  %618 = vmatpush.msra.mxu0 0.0
  %619 = vmatpush.msra.mxu0 0.0
  %620 = vmatpush.msra.mxu0 0.0
  %621 = vmatpush.msra.mxu0 0.0
  %622 = vmatpush.msra.mxu0 0.0
  %623 = vmatpush.msra.mxu0 %v601
  %624 = vmatpush.msra.mxu0 %v599
  %625 = vmatpush.msra.mxu0 %v597
  %626 = vmatpush.msra.mxu0 %v595
  %627 = vmatmul.f32.gmra.mxu0 %v609
  %v628 = vpop.f32.mrf.mxu0
  %v629 = vadd.f32 %v606, %v628
  %630 = vdwg.mxu0
  %631 = vmatpush.msra.mxu0 0.0
  %632 = vmatpush.msra.mxu0 0.0
  %633 = vmatpush.msra.mxu0 0.0
  %634 = vmatpush.msra.mxu0 0.0
  %635 = vmatpush.msra.mxu0 0.0
  %636 = vmatpush.msra.mxu0 0.0
  %637 = vmatpush.msra.mxu0 0.0
  %638 = vmatpush.msra.mxu0 0.0
  %639 = vmatpush.msra.mxu0 0.0
  %640 = vmatpush.msra.mxu0 0.0
  %641 = vmatpush.msra.mxu0 0.0
  %642 = vmatpush.msra.mxu0 0.0
  %643 = vmatpush.msra.mxu0 %v602
  %644 = vmatpush.msra.mxu0 %v600
  %645 = vmatpush.msra.mxu0 %v598
  %646 = vmatpush.msra.mxu0 %v596
  %647 = vmatmul.f32.gmra.mxu0 %v609
  %v648 = vpop.f32.mrf.mxu0
  %v649 = vadd.f32 %v606, %v648
  %650 = vdwg.mxu0
  %v651 = vxor.u32 %v629, 2147483648
  %v652 = vxor.u32 %v649, 2147483648
  %v653 = vmul.f32 %v651, 1.442695
  %v654 = vpow.pop %v653
  %v655 = vmul.f32 %v652, 1.442695
  %v656 = vpow.pop %v655
  %v657 = vadd.f32 %v654, 1.0
  %v658 = vadd.f32 %v656, 1.0
  %v659 = vrcp.pop %v657
  %v660 = vmul.f32 %v657, %v659
  %v661 = vsub.f32 1.0, %v660
  %v662 = vmul.f32 %v659, %v661
  %v663 = vadd.f32 %v659, %v662
  %vm664 = vweird.f32 %v657
  %vm665 = vweird.f32 %v659
  %vm666 = vmor %vm664, %vm665
  %v667 = vsel %vm666, %v659, %v663
  %v668 = vand.u32 2147483647, %v657
  %vm669 = vcmp.eq.f32.partialorder %v668, 8.507059e+37
  %v670 = vand.u32 %v657, 2147483648
  %v671 = vor.u32 1.1754944e-38, %v670
  %v672 = vsel %vm669, %v671, %v667
  %v673 = vmul.f32 1.0, %v672
  %v674 = vrcp.pop %v658
  %v675 = vmul.f32 %v658, %v674
  %v676 = vsub.f32 1.0, %v675
  %v677 = vmul.f32 %v674, %v676
  %v678 = vadd.f32 %v674, %v677
  %vm679 = vweird.f32 %v658
  %vm680 = vweird.f32 %v674
  %vm681 = vmor %vm679, %vm680
  %v682 = vsel %vm681, %v674, %v678
  %v683 = vand.u32 2147483647, %v658
  %vm684 = vcmp.eq.f32.partialorder %v683, 8.507059e+37
  %v685 = vand.u32 %v658, 2147483648
  %v686 = vor.u32 1.1754944e-38, %v685
  %v687 = vsel %vm684, %v686, %v682
  %v688 = vmul.f32 1.0, %v687
  %689 = vst [vmem:[%s3] sm:$0xff] %v673
  %690 = vst [vmem:[%s3 + $0x8] sm:$0xff] %v688
  // Predicated region
  $region14: #{fc_net_forward.1} parent=0 // pred_check
    _
  $region15: #{fc_net_forward.1} parent=0 // pred_check_branch
    %692 = sbr.rel (0) target = $region17
  $region16: #{fc_net_forward.1} parent=0 // pred_region
    _
  $region17: #{fc_net_forward.1} parent=0 // pred_fallthru
    _
  // Predicated region
  $region18: #{fc_net_forward.1} parent=0 // pred_check
    _
  $region19: #{fc_net_forward.1} parent=0 // pred_check_branch
    %694 = sbr.rel (0) target = $region21
  $region20: #{fc_net_forward.1} parent=0 // pred_region
    _
  $region21: #{fc_net_forward.1} parent=0 // pred_fallthru
    _

</llo_original>
